<compile_context>
chip_gen: v7x
topology: tpu7x:2x2x1
jax: 0.10.0
libtpu: 0.0.40
codegen_flags: <defaults>
</compile_context>

<pallas_src>
import math
from functools import partial

import jax
import jax.numpy as jnp
from jax import lax
from jax.experimental import pallas as pl
from jax.experimental.pallas import tpu as pltpu  # noqa: F401  (TPU backend)


def _round_up(x, m):
    return ((x + m - 1) // m) * m


def _slab_layout(n_dim, hidden, output_dim):
    """Static row layout of the packed parameter slab (all blocks P lanes)."""
    P = _round_up(max(n_dim, hidden, output_dim), 128)
    r_qw_rows = _round_up(n_dim + 1, 8)        # [Q; w] block (Q rows first, w last)
    r_qw = 0
    r_w1 = r_qw + r_qw_rows                     # W1 block: (P, P)
    r_w2 = r_w1 + P                             # W2 block: (P, P)
    r_fc = r_w2 + P                             # Wfc block: (round_up(n_dim,8), P)
    r_b = r_fc + _round_up(n_dim, 8)            # bias block: 8 rows (b1, b2, bfc)
    rows = r_b + 8
    return P, rows, r_qw_rows, (r_qw, r_w1, r_w2, r_fc, r_b)


def pack_params(params, n_dim, hidden, output_dim):
    """One-time packing of all parameters into a single lane-padded slab.

    Called ONCE at setup — never in the per-call path.
    """
    (w, Q, W1, b1, W2, b2, Wfc, bfc) = params
    P, rows, _, (r_qw, r_w1, r_w2, r_fc, r_b) = _slab_layout(n_dim, hidden, output_dim)

    slab = jnp.zeros((rows, P), jnp.float32)
    # [Q; w] with Q first (keeps the post-MLP Q slice sublane-aligned).
    slab = slab.at[r_qw:r_qw + n_dim, :n_dim].set(Q)
    slab = slab.at[r_qw + n_dim, :n_dim].set(w[0])
    # p_model weights (zero padding is mathematically inert in the dots).
    slab = slab.at[r_w1:r_w1 + n_dim, :hidden].set(W1)
    slab = slab.at[r_w2:r_w2 + hidden, :n_dim].set(W2)
    # fc weight.
    slab = slab.at[r_fc:r_fc + n_dim, :output_dim].set(Wfc)
    # Biases, each lane-padded to P.
    slab = slab.at[r_b, :hidden].set(b1[0])
    slab = slab.at[r_b + 1, :n_dim].set(b2[0])
    slab = slab.at[r_b + 2, :output_dim].set(bfc[0])
    return slab


@partial(jax.jit, static_argnames=("n_dim", "hidden", "output_dim"))
def kalman_filter_forward(T, E, slab, *, n_dim, hidden, output_dim):
    """T: (seq, n_dim) f32.  E: (seq, n_dim) f32 noise (one row per loop step).
    slab: packed parameters from `pack_params`.  Returns (output_dim,) f32."""
    P, rows, qw_rows, (r_qw, r_w1, r_w2, r_fc, r_b) = _slab_layout(
        n_dim, hidden, output_dim)
    seq = T.shape[0]

    # Only per-call work: the tiny dynamic input, lane-padded so every read /
    # contraction inside the kernel is a full 128-lane op.
    te = (jnp.zeros((2, P), jnp.float32)
          .at[0, :n_dim].set(T[seq - 1])
          .at[1, :n_dim].set(E[seq - 1]))

    def kernel(te_ref, slab_ref, o_ref):
        # Static, 8-aligned sublane slices of the single parameter slab (free).
        qw = slab_ref[r_qw:r_qw + qw_rows, :]          # (qw_rows, P) [Q; w; pad]
        W1 = slab_ref[r_w1:r_w1 + P, :]                # (P, P)
        W2 = slab_ref[r_w2:r_w2 + P, :]                # (P, P)
        Wfc = slab_ref[r_fc:r_fc + n_dim, :]           # (n_dim, P)
        b1 = slab_ref[r_b:r_b + 1, :]                  # (1, P)
        b2 = slab_ref[r_b + 1:r_b + 2, :]              # (1, P)
        bfc = slab_ref[r_b + 2:r_b + 3, :]             # (1, P)

        # Fused row-wise p_model on [Q; w]: one dot -> tanh -> dot pass.
        h = jnp.tanh(jnp.dot(qw, W1, preferred_element_type=jnp.float32) + b1)
        d = jnp.dot(h, W2, preferred_element_type=jnp.float32) + b2
        qw_new = qw + d                                # Q' rows then w' row
        Q_new = qw_new[0:n_dim, :]                     # (n_dim, P), aligned
        w_new = qw_new[n_dim:n_dim + 1, :]             # (1, P)

        te_v = te_ref[...]
        t_last = te_v[0:1, :]                          # (1, P)
        e_last = te_v[1:2, :]                          # (1, P)

        # Contract the last dims directly — no materialized transpose.
        # p_wst[0,0] = sum_j w'[j] * t[j] ; p_Qe[0,i] = sum_j Q'[i,j] * e[j]
        p_wst = lax.dot_general(t_last, w_new, (((1,), (1,)), ((), ())),
                                preferred_element_type=jnp.float32)   # (1, 1)
        p_Qe = lax.dot_general(e_last, Q_new, (((1,), (1,)), ((), ())),
                               preferred_element_type=jnp.float32)    # (1, n_dim)
        st = p_wst + p_Qe                                             # (1, n_dim)

        # fc: lane-padded weight/bias -> dense (1, P) store (unmasked vst).
        o_ref[...] = jnp.dot(st, Wfc, preferred_element_type=jnp.float32) + bfc

    full = lambda shape: pl.BlockSpec(shape, lambda: (0,) * len(shape))

    flops = (2 * qw_rows * P * P * 2          # fused MLP (two dots)
             + 2 * P + 2 * P * n_dim          # the two matvecs
             + 2 * n_dim * P)                 # fc
    cost = pl.CostEstimate(
        flops=flops,
        transcendentals=qw_rows * P,
        bytes_accessed=4 * (2 * P + rows * P + P),
    )

    out = pl.pallas_call(
        kernel,
        out_shape=jax.ShapeDtypeStruct((1, P), jnp.float32),
        in_specs=[
            full((2, P)),        # te: last T row + last noise draw (lane-padded)
            full((rows, P)),     # packed parameter slab (single DMA)
        ],
        out_specs=full((1, P)),
        cost_estimate=cost,
    )(te, slab)
    return out[0, :output_dim]


def reference_forward(T, E, params):
    """Plain-JAX mirror of the PyTorch loop (for correctness check)."""
    (w, Q, W1, b1, W2, b2, Wfc, bfc) = params
    out = None
    for s in range(T.shape[0]):
        st = T[s]
        e = E[s]
        wd = jnp.tanh(w @ W1 + b1) @ W2 + b2
        dQ = jnp.tanh(Q @ W1 + b1) @ W2 + b2
        w_new = w + wd
        Q_new = Q + dQ
        p_wst = w_new @ st[:, None]          # (1, 1)
        p_Qe = Q_new @ e[:, None]            # (n_dim, 1)
        out = (p_wst + p_Qe).reshape(-1)     # (n_dim,)
    return (out[None, :] @ Wfc + bfc).reshape(-1)


def init_params(key, n_dim, hidden, output_dim):
    stdv = 1.0 / math.sqrt(n_dim)
    ks = jax.random.split(key, 8)
    w = jax.random.normal(ks[0], (1, n_dim), jnp.float32) * stdv
    Q = jax.random.normal(ks[1], (n_dim, n_dim), jnp.float32) * stdv
    # parameter_network (assumed 2-layer row-wise MLP), stored transposed for x @ W
    W1 = jax.random.normal(ks[2], (n_dim, hidden), jnp.float32) * (1.0 / math.sqrt(n_dim))
    b1 = jax.random.normal(ks[3], (1, hidden), jnp.float32) * 0.01
    W2 = jax.random.normal(ks[4], (hidden, n_dim), jnp.float32) * (1.0 / math.sqrt(hidden))
    b2 = jax.random.normal(ks[5], (1, n_dim), jnp.float32) * 0.01
    # fc: Linear(n_dim, output_dim)
    Wfc = jax.random.normal(ks[6], (n_dim, output_dim), jnp.float32) * (1.0 / math.sqrt(n_dim))
    bfc = jax.random.normal(ks[7], (1, output_dim), jnp.float32) * 0.01
    return (w, Q, W1, b1, W2, b2, Wfc, bfc)


if __name__ == "__main__":
    n_dim, hidden, output_dim, seq = 32, 64, 8, 8

    key = jax.random.PRNGKey(0)
    k_param, k_T, k_E = jax.random.split(key, 3)

    params = init_params(k_param, n_dim, hidden, output_dim)
    T = jax.random.normal(k_T, (seq, n_dim), jnp.float32)
    # th.randn_like(self.w) noise, one draw per loop step, pre-drawn here.
    # Only the last draw affects the surviving output.
    E = jax.random.normal(k_E, (seq, n_dim), jnp.float32)

    # One-time parameter packing (hoisted out of the per-call path).
    slab = jax.block_until_ready(pack_params(params, n_dim, hidden, output_dim))

    y = kalman_filter_forward(T, E, slab,
                              n_dim=n_dim, hidden=hidden, output_dim=output_dim)
    y = jax.block_until_ready(y)

    y_ref = reference_forward(T, E, params)
    assert y.shape == (output_dim,)
    assert jnp.allclose(y, y_ref, rtol=1e-4, atol=1e-4), (y, y_ref)

    print("KERNEL_OK")
</pallas_src>

<mosaic_0001>
module attributes {stable_mosaic.version = 11 : i64} {
  func.func @kernel(%arg0: memref<2x128xf32, #tpu.memory_space<vmem>>, %arg1: memref<336x128xf32, #tpu.memory_space<vmem>>, %arg2: memref<1x128xf32, #tpu.memory_space<vmem>>) attributes {dimension_semantics = [], scalar_prefetch = 0 : i64, scratch_operands = 0 : i64, tpu.core_type = #tpu.core_type<tc>} {
    %c0 = arith.constant 0 : index
    %c0_0 = arith.constant 0 : index
    %0 = vector.load %arg1[%c0, %c0_0] : memref<336x128xf32, #tpu.memory_space<vmem>>, vector<40x128xf32>
    %c40 = arith.constant 40 : index
    %c0_1 = arith.constant 0 : index
    %1 = vector.load %arg1[%c40, %c0_1] : memref<336x128xf32, #tpu.memory_space<vmem>>, vector<128x128xf32>
    %c168 = arith.constant 168 : index
    %c0_2 = arith.constant 0 : index
    %2 = vector.load %arg1[%c168, %c0_2] : memref<336x128xf32, #tpu.memory_space<vmem>>, vector<128x128xf32>
    %c296 = arith.constant 296 : index
    %c0_3 = arith.constant 0 : index
    %3 = vector.load %arg1[%c296, %c0_3] : memref<336x128xf32, #tpu.memory_space<vmem>>, vector<32x128xf32>
    %c328 = arith.constant 328 : index
    %c0_4 = arith.constant 0 : index
    %4 = vector.load %arg1[%c328, %c0_4] : memref<336x128xf32, #tpu.memory_space<vmem>>, vector<1x128xf32>
    %c329 = arith.constant 329 : index
    %c0_5 = arith.constant 0 : index
    %5 = vector.load %arg1[%c329, %c0_5] : memref<336x128xf32, #tpu.memory_space<vmem>>, vector<1x128xf32>
    %c330 = arith.constant 330 : index
    %c0_6 = arith.constant 0 : index
    %6 = vector.load %arg1[%c330, %c0_6] : memref<336x128xf32, #tpu.memory_space<vmem>>, vector<1x128xf32>
    %cst = arith.constant dense<0.000000e+00> : vector<40x128xf32>
    %7 = tpu.matmul %0, %1, %cst {dimension_numbers = #tpu.dot_dimension_numbers<[1], [0], [0], [1], [0, 0, 1, 1], [], []>} : vector<40x128xf32>, vector<128x128xf32>, vector<40x128xf32> -> vector<40x128xf32>
    %8 = vector.broadcast %4 : vector<1x128xf32> to vector<40x128xf32>
    %9 = arith.addf %7, %8 : vector<40x128xf32>
    %10 = math.tanh %9 : vector<40x128xf32>
    %cst_7 = arith.constant dense<0.000000e+00> : vector<40x128xf32>
    %11 = tpu.matmul %10, %2, %cst_7 {dimension_numbers = #tpu.dot_dimension_numbers<[1], [0], [0], [1], [0, 0, 1, 1], [], []>} : vector<40x128xf32>, vector<128x128xf32>, vector<40x128xf32> -> vector<40x128xf32>
    %12 = vector.broadcast %5 : vector<1x128xf32> to vector<40x128xf32>
    %13 = arith.addf %11, %12 : vector<40x128xf32>
    %14 = arith.addf %0, %13 : vector<40x128xf32>
    %15 = vector.extract_strided_slice %14 {offsets = [0, 0], sizes = [32, 128], strides = [1, 1]} : vector<40x128xf32> to vector<32x128xf32>
    %16 = vector.extract_strided_slice %14 {offsets = [32, 0], sizes = [1, 128], strides = [1, 1]} : vector<40x128xf32> to vector<1x128xf32>
    %c0_8 = arith.constant 0 : index
    %c0_9 = arith.constant 0 : index
    %17 = vector.load %arg0[%c0_8, %c0_9] : memref<2x128xf32, #tpu.memory_space<vmem>>, vector<2x128xf32>
    %18 = vector.extract_strided_slice %17 {offsets = [0, 0], sizes = [1, 128], strides = [1, 1]} : vector<2x128xf32> to vector<1x128xf32>
    %19 = vector.extract_strided_slice %17 {offsets = [1, 0], sizes = [1, 128], strides = [1, 1]} : vector<2x128xf32> to vector<1x128xf32>
    %cst_10 = arith.constant dense<0.000000e+00> : vector<1x1xf32>
    %20 = tpu.matmul %18, %16, %cst_10 {dimension_numbers = #tpu.dot_dimension_numbers<[1], [1], [0], [0], [0, 0, 1, 0], [], []>} : vector<1x128xf32>, vector<1x128xf32>, vector<1x1xf32> -> vector<1x1xf32>
    %cst_11 = arith.constant dense<0.000000e+00> : vector<1x32xf32>
    %21 = tpu.matmul %19, %15, %cst_11 {dimension_numbers = #tpu.dot_dimension_numbers<[1], [1], [0], [0], [0, 0, 1, 0], [], []>} : vector<1x128xf32>, vector<32x128xf32>, vector<1x32xf32> -> vector<1x32xf32>
    %22 = vector.broadcast %20 : vector<1x1xf32> to vector<1x32xf32>
    %23 = arith.addf %22, %21 : vector<1x32xf32>
    %cst_12 = arith.constant dense<0.000000e+00> : vector<1x128xf32>
    %24 = tpu.matmul %23, %3, %cst_12 {dimension_numbers = #tpu.dot_dimension_numbers<[1], [0], [0], [1], [0, 0, 1, 1], [], []>} : vector<1x32xf32>, vector<32x128xf32>, vector<1x128xf32> -> vector<1x128xf32>
    %25 = arith.addf %24, %6 : vector<1x128xf32>
    %c0_13 = arith.constant 0 : index
    %c0_14 = arith.constant 0 : index
    %26 = vector.load %arg2[%c0_13, %c0_14] : memref<1x128xf32, #tpu.memory_space<vmem>>, vector<1x128xf32>
    tpu.vector_store %arg2[%c0_13, %c0_14], %25 {strides = array<i32>} : memref<1x128xf32, #tpu.memory_space<vmem>>, vector<1x128xf32>,
    return
  }
}

</mosaic_0001>

<llo_original>
// kernel: kalman_filter_forward.1
$region0: #{kalman_filter_forward.1}
  #allocation0 [shape = 'u32[]', space=smem, size = 0x4, offset = 0x4, fixed_abs, tag = 'smem constant byte address 0x4 - core index']
  #allocation1 [shape = 'u32[144,128]{1,0:T(1,128)}', space=vmem, size = 0x12000, scoped, tag = 'internal scratch']
  %s0 = inlined_call_operand.vmem [shape: f32[2,128], index: 0, kind: input, shape index: {}]
  %s1 = inlined_call_operand.hbm [shape: f32[336,128], index: 1, kind: input, shape index: {}]
  %s2 = inlined_call_operand.vmem [shape: f32[1,128], index: 2, kind: output, shape index: {}]
  %s3 = sld [smem:[#allocation0]]
  $region22: #{kalman_filter_forward.1} parent=0
    _
  %s5 = ssub.s32 1, %s3
  %s6 = scalar_select 0, %s5, %s3
  $region1: #{kalman_filter_forward.1} parent=0
    #allocation2 [shape = 'u8[172032]{0}', space=vmem, size = 0x2a000, scoped, tag = 'input window, operand 1, single buffered']
    #allocation3 [shape = 's32[1]{0}', space=sflag, size = 0x4, scoped, tag = 'scoped memory for kalman_filter_forward.1']
    %7 = vsyncpa [#allocation3], 0
    // Predicated region
    $region2: #{kalman_filter_forward.1} parent=1 // pred_check
      _
    $region3: #{kalman_filter_forward.1} parent=1 // pred_check_branch
      %9 = sbr.rel (0) target = $region5
    $region4: #{kalman_filter_forward.1} parent=1 // pred_region
      _
    $region5: #{kalman_filter_forward.1} parent=1 // pred_fallthru
      _
    // Predicated region
    $region6: #{kalman_filter_forward.1} parent=1 // pred_check
      _
    $region7: #{kalman_filter_forward.1} parent=1 // pred_check_branch
      %11 = sbr.rel (0) target = $region9
    $region8: #{kalman_filter_forward.1} parent=1 // pred_region
      %s13 = ssub.s32 5376, 5376
      %14 = vsyncadd [#allocation3], %s13
      %s15 = sshll.u32 [#allocation2], 4
      %s16 = int_to_ptr.vmem [resolvable:$true] %s15
      %21 = dma.hbm_to_vmem [thread:$0]  %s1, 5376, %s16, [#allocation3], 128, 128, 8
    $region9: #{kalman_filter_forward.1} parent=1 // pred_fallthru
      _
    // Predicated region
    $region10: #{kalman_filter_forward.1} parent=1 // pred_check
      _
    $region11: #{kalman_filter_forward.1} parent=1 // pred_check_branch
      %23 = sbr.rel (0) target = $region13
    $region12: #{kalman_filter_forward.1} parent=1 // pred_region
      %24 = dma.done [#allocation3], 5376
    $region13: #{kalman_filter_forward.1} parent=1 // pred_fallthru
      _
    %v25 = vld [vmem:[#allocation2] sm:$0xff]
    %v26 = vld [vmem:[#allocation2 + $0x8] sm:$0xff]
    %v27 = vld [vmem:[#allocation2 + $0x10] sm:$0xff]
    %v28 = vld [vmem:[#allocation2 + $0x18] sm:$0xff]
    %v29 = vld [vmem:[#allocation2 + $0x20] sm:$0xff]
    %v30 = vld [vmem:[#allocation2 + $0x28] sm:$0xff]
    %v31 = vld [vmem:[#allocation2 + $0x30] sm:$0xff]
    %v32 = vld [vmem:[#allocation2 + $0x38] sm:$0xff]
    %v33 = vld [vmem:[#allocation2 + $0x40] sm:$0xff]
    %v34 = vld [vmem:[#allocation2 + $0x48] sm:$0xff]
    %v35 = vld [vmem:[#allocation2 + $0x50] sm:$0xff]
    %v36 = vld [vmem:[#allocation2 + $0x58] sm:$0xff]
    %v37 = vld [vmem:[#allocation2 + $0x60] sm:$0xff]
    %v38 = vld [vmem:[#allocation2 + $0x68] sm:$0xff]
    %v39 = vld [vmem:[#allocation2 + $0x70] sm:$0xff]
    %v40 = vld [vmem:[#allocation2 + $0x78] sm:$0xff]
    %v41 = vld [vmem:[#allocation2 + $0x80] sm:$0xff]
    %v42 = vld [vmem:[#allocation2 + $0x88] sm:$0xff]
    %v43 = vld [vmem:[#allocation2 + $0x90] sm:$0xff]
    %v44 = vld [vmem:[#allocation2 + $0x98] sm:$0xff]
    %v45 = vld [vmem:[#allocation2 + $0xa0] sm:$0xff]
    %v46 = vld [vmem:[#allocation2 + $0xa8] sm:$0xff]
    %v47 = vld [vmem:[#allocation2 + $0xb0] sm:$0xff]
    %v48 = vld [vmem:[#allocation2 + $0xb8] sm:$0xff]
    %v49 = vld [vmem:[#allocation2 + $0xc0] sm:$0xff]
    %v50 = vld [vmem:[#allocation2 + $0xc8] sm:$0xff]
    %v51 = vld [vmem:[#allocation2 + $0xd0] sm:$0xff]
    %v52 = vld [vmem:[#allocation2 + $0xd8] sm:$0xff]
    %v53 = vld [vmem:[#allocation2 + $0xe0] sm:$0xff]
    %v54 = vld [vmem:[#allocation2 + $0xe8] sm:$0xff]
    %v55 = vld [vmem:[#allocation2 + $0xf0] sm:$0xff]
    %v56 = vld [vmem:[#allocation2 + $0xf8] sm:$0xff]
    %v57 = vld [vmem:[#allocation2 + $0x100] sm:$0xff]
    %v58 = vld [vmem:[#allocation2 + $0x108] sm:$0xff]
    %v59 = vld [vmem:[#allocation2 + $0x110] sm:$0xff]
    %v60 = vld [vmem:[#allocation2 + $0x118] sm:$0xff]
    %v61 = vld [vmem:[#allocation2 + $0x120] sm:$0xff]
    %v62 = vld [vmem:[#allocation2 + $0x128] sm:$0xff]
    %v63 = vld [vmem:[#allocation2 + $0x130] sm:$0xff]
    %v64 = vld [vmem:[#allocation2 + $0x138] sm:$0xff]
    %v65 = vld [vmem:[#allocation2 + $0x140] sm:$0xff]
    %v66 = vld [vmem:[#allocation2 + $0x148] sm:$0x1]
    %v67 = vld [vmem:[#allocation2 + $0x149] sm:$0x1]
    %v68 = vld [vmem:[#allocation2 + $0x14a] sm:$0x1]
    %v69 = vlaneseq
    %v70 = vshrl.u32 %v69, 7
    %v71 = vsub.s32 0, %v70
    %v72 = vrot.slane %v66, %v71
    %73 = vmatprep.subr.mxu0 0.0
    %74 = vmatpush1.msra.mxu0 %v30
    %75 = vmatprep.subr.mxu0 0.0
    %76 = vmatpush1.msra.mxu0 %v31
    %77 = vmatprep.subr.mxu0 0.0
    %78 = vmatpush1.msra.mxu0 %v32
    %79 = vmatprep.subr.mxu0 0.0
    %80 = vmatpush1.msra.mxu0 %v33
    %81 = vmatprep.subr.mxu0 0.0
    %82 = vmatpush1.msra.mxu0 %v34
    %83 = vmatprep.subr.mxu0 0.0
    %84 = vmatpush1.msra.mxu0 %v35
    %85 = vmatprep.subr.mxu0 0.0
    %86 = vmatpush1.msra.mxu0 %v36
    %87 = vmatprep.subr.mxu0 0.0
    %88 = vmatpush1.msra.mxu0 %v37
    %89 = vmatprep.subr.mxu0 0.0
    %90 = vmatpush1.msra.mxu0 %v38
    %91 = vmatprep.subr.mxu0 0.0
    %92 = vmatpush1.msra.mxu0 %v39
    %93 = vmatprep.subr.mxu0 0.0
    %94 = vmatpush1.msra.mxu0 %v40
    %95 = vmatprep.subr.mxu0 0.0
    %96 = vmatpush1.msra.mxu0 %v41
    %97 = vmatprep.subr.mxu0 0.0
    %98 = vmatpush1.msra.mxu0 %v42
    %99 = vmatprep.subr.mxu0 0.0
    %100 = vmatpush1.msra.mxu0 %v43
    %101 = vmatprep.subr.mxu0 0.0
    %102 = vmatpush1.msra.mxu0 %v44
    %103 = vmatprep.subr.mxu0 0.0
    %104 = vmatpush1.msra.mxu0 %v45
    %105 = vmatprep.subr.mxu0 0.0
    %106 = vmatpush1.msra.mxu0 0.0
    %107 = vmatprep.subr.mxu0 0.0
    %108 = vmatpush1.msra.mxu0 0.0
    %109 = vmatprep.subr.mxu0 0.0
    %110 = vmatpush1.msra.mxu0 0.0
    %111 = vmatprep.subr.mxu0 0.0
    %112 = vmatpush1.msra.mxu0 0.0
    %113 = vmatprep.subr.mxu0 0.0
    %114 = vmatpush1.msra.mxu0 0.0
    %115 = vmatprep.subr.mxu0 0.0
    %116 = vmatpush1.msra.mxu0 0.0
    %117 = vmatprep.subr.mxu0 0.0
    %118 = vmatpush1.msra.mxu0 0.0
    %119 = vmatprep.subr.mxu0 0.0
    %120 = vmatpush1.msra.mxu0 0.0
    %121 = vmatprep.subr.mxu0 0.0
    %122 = vmatpush1.msra.mxu0 0.0
    %123 = vmatprep.subr.mxu0 0.0
    %124 = vmatpush1.msra.mxu0 0.0
    %125 = vmatprep.subr.mxu0 0.0
    %126 = vmatpush1.msra.mxu0 0.0
    %127 = vmatprep.subr.mxu0 0.0
    %128 = vmatpush1.msra.mxu0 0.0
    %129 = vmatprep.subr.mxu0 0.0
    %130 = vmatpush1.msra.mxu0 0.0
    %131 = vmatprep.subr.mxu0 0.0
    %132 = vmatpush1.msra.mxu0 0.0
    %133 = vmatprep.subr.mxu0 0.0
    %134 = vmatpush1.msra.mxu0 0.0
    %135 = vmatprep.subr.mxu0 0.0
    %136 = vmatpush1.msra.mxu0 0.0
    %137 = vmatprep.mubr.f32.mxu0 0.0
    %138 = vmatmul.mubr.f32.gmra.mrb[0].mxu0 %v25
    %v139 = vpop.f32.mrb[0].mxu0
    %v140 = vadd.f32 %v72, %v139
    %v141 = vpop.f32.mrb[0].mxu0
    %142 = vmatprep.mubr.f32.mxu0 0.0
    %143 = vmatmul.mubr.f32.gmra.mrb[0].mxu0 %v26
    %v144 = vpop.f32.mrb[0].mxu0
    %v145 = vadd.f32 %v72, %v144
    %v146 = vpop.f32.mrb[0].mxu0
    %147 = vmatprep.mubr.f32.mxu0 0.0
    %148 = vmatmul.mubr.f32.gmra.mrb[0].mxu0 %v27
    %v149 = vpop.f32.mrb[0].mxu0
    %v150 = vadd.f32 %v72, %v149
    %v151 = vpop.f32.mrb[0].mxu0
    %152 = vmatprep.mubr.f32.mxu0 0.0
    %153 = vmatmul.mubr.f32.gmra.mrb[0].mxu0 %v28
    %v154 = vpop.f32.mrb[0].mxu0
    %v155 = vadd.f32 %v72, %v154
    %v156 = vpop.f32.mrb[0].mxu0
    %157 = vmatprep.mubr.f32.mxu0 0.0
    %158 = vmatmul.mubr.f32.gmra.mrb[0].mxu0 %v29
    %v159 = vpop.f32.mrb[0].mxu0
    %v160 = vadd.f32 %v72, %v159
    %v161 = vpop.f32.mrb[0].mxu0
    %162 = vdwg.mxu0
    %v163 = vtanh.pop %v140
    %v164 = vtanh.pop %v145
    %v165 = vtanh.pop %v150
    %v166 = vtanh.pop %v155
    %v167 = vtanh.pop %v160
    %v168 = vlaneseq
    %v169 = vshrl.u32 %v168, 7
    %v170 = vsub.s32 0, %v169
    %v171 = vrot.slane %v67, %v170
    %172 = vmatprep.subr.mxu0 0.0
    %173 = vmatpush1.msra.mxu0 %v46
    %174 = vmatprep.subr.mxu0 0.0
    %175 = vmatpush1.msra.mxu0 %v47
    %176 = vmatprep.subr.mxu0 0.0
    %177 = vmatpush1.msra.mxu0 %v48
    %178 = vmatprep.subr.mxu0 0.0
    %179 = vmatpush1.msra.mxu0 %v49
    %180 = vmatprep.subr.mxu0 0.0
    %181 = vmatpush1.msra.mxu0 %v50
    %182 = vmatprep.subr.mxu0 0.0
    %183 = vmatpush1.msra.mxu0 %v51
    %184 = vmatprep.subr.mxu0 0.0
    %185 = vmatpush1.msra.mxu0 %v52
    %186 = vmatprep.subr.mxu0 0.0
    %187 = vmatpush1.msra.mxu0 %v53
    %188 = vmatprep.subr.mxu0 0.0
    %189 = vmatpush1.msra.mxu0 %v54
    %190 = vmatprep.subr.mxu0 0.0
    %191 = vmatpush1.msra.mxu0 %v55
    %192 = vmatprep.subr.mxu0 0.0
    %193 = vmatpush1.msra.mxu0 %v56
    %194 = vmatprep.subr.mxu0 0.0
    %195 = vmatpush1.msra.mxu0 %v57
    %196 = vmatprep.subr.mxu0 0.0
    %197 = vmatpush1.msra.mxu0 %v58
    %198 = vmatprep.subr.mxu0 0.0
    %199 = vmatpush1.msra.mxu0 %v59
    %200 = vmatprep.subr.mxu0 0.0
    %201 = vmatpush1.msra.mxu0 %v60
    %202 = vmatprep.subr.mxu0 0.0
    %203 = vmatpush1.msra.mxu0 %v61
    %204 = vmatprep.subr.mxu0 0.0
    %205 = vmatpush1.msra.mxu0 0.0
    %206 = vmatprep.subr.mxu0 0.0
    %207 = vmatpush1.msra.mxu0 0.0
    %208 = vmatprep.subr.mxu0 0.0
    %209 = vmatpush1.msra.mxu0 0.0
    %210 = vmatprep.subr.mxu0 0.0
    %211 = vmatpush1.msra.mxu0 0.0
    %212 = vmatprep.subr.mxu0 0.0
    %213 = vmatpush1.msra.mxu0 0.0
    %214 = vmatprep.subr.mxu0 0.0
    %215 = vmatpush1.msra.mxu0 0.0
    %216 = vmatprep.subr.mxu0 0.0
    %217 = vmatpush1.msra.mxu0 0.0
    %218 = vmatprep.subr.mxu0 0.0
    %219 = vmatpush1.msra.mxu0 0.0
    %220 = vmatprep.subr.mxu0 0.0
    %221 = vmatpush1.msra.mxu0 0.0
    %222 = vmatprep.subr.mxu0 0.0
    %223 = vmatpush1.msra.mxu0 0.0
    %224 = vmatprep.subr.mxu0 0.0
    %225 = vmatpush1.msra.mxu0 0.0
    %226 = vmatprep.subr.mxu0 0.0
    %227 = vmatpush1.msra.mxu0 0.0
    %228 = vmatprep.subr.mxu0 0.0
    %229 = vmatpush1.msra.mxu0 0.0
    %230 = vmatprep.subr.mxu0 0.0
    %231 = vmatpush1.msra.mxu0 0.0
    %232 = vmatprep.subr.mxu0 0.0
    %233 = vmatpush1.msra.mxu0 0.0
    %234 = vmatprep.subr.mxu0 0.0
    %235 = vmatpush1.msra.mxu0 0.0
    %236 = vmatprep.mubr.f32.mxu0 0.0
    %237 = vmatmul.mubr.f32.gmra.mrb[0].mxu0 %v163
    %v238 = vpop.f32.mrb[0].mxu0
    %v239 = vadd.f32 %v171, %v238
    %v240 = vpop.f32.mrb[0].mxu0
    %241 = vmatprep.mubr.f32.mxu0 0.0
    %242 = vmatmul.mubr.f32.gmra.mrb[0].mxu0 %v164
    %v243 = vpop.f32.mrb[0].mxu0
    %v244 = vadd.f32 %v171, %v243
    %v245 = vpop.f32.mrb[0].mxu0
    %246 = vmatprep.mubr.f32.mxu0 0.0
    %247 = vmatmul.mubr.f32.gmra.mrb[0].mxu0 %v165
    %v248 = vpop.f32.mrb[0].mxu0
    %v249 = vadd.f32 %v171, %v248
    %v250 = vpop.f32.mrb[0].mxu0
    %251 = vmatprep.mubr.f32.mxu0 0.0
    %252 = vmatmul.mubr.f32.gmra.mrb[0].mxu0 %v166
    %v253 = vpop.f32.mrb[0].mxu0
    %v254 = vadd.f32 %v171, %v253
    %v255 = vpop.f32.mrb[0].mxu0
    %256 = vmatprep.mubr.f32.mxu0 0.0
    %257 = vmatmul.mubr.f32.gmra.mrb[0].mxu0 %v167
    %v258 = vpop.f32.mrb[0].mxu0
    %v259 = vadd.f32 %v171, %v258
    %v260 = vpop.f32.mrb[0].mxu0
    %261 = vdwg.mxu0
    %v262 = vadd.f32 %v25, %v239
    %v263 = vadd.f32 %v26, %v244
    %v264 = vadd.f32 %v27, %v249
    %v265 = vadd.f32 %v28, %v254
    %v266 = vadd.f32 %v29, %v259
    %v267 = vld [vmem:[%s0] sm:$0x3]
    %v268 = vmul.f32 %v267, %v266
    %vm269 = vcmask 1040384
    %v270 = vsel %vm269, %v268, 0.0
    %271 = vadd.xlane.f32.xlu0 %v270
    %v272 = vpop.xlane.xlu0 %271
    %v274 = vrot.slane %v267, 1
    %276 = vmatprep.subr.mxu0 0.0
    %277 = vmatpush1.xpose.msra.mxu0 %v262
    %278 = vmatprep.subr.mxu0 0.0
    %279 = vmatpush1.xpose.msra.mxu0 %v263
    %280 = vmatprep.subr.mxu0 0.0
    %281 = vmatpush1.xpose.msra.mxu0 %v264
    %282 = vmatprep.subr.mxu0 0.0
    %283 = vmatpush1.xpose.msra.mxu0 %v265
    %284 = vmatprep.subr.mxu0 0.0
    %285 = vmatpush1.xpose.msra.mxu0 0.0
    %286 = vmatprep.subr.mxu0 0.0
    %287 = vmatpush1.xpose.msra.mxu0 0.0
    %288 = vmatprep.subr.mxu0 0.0
    %289 = vmatpush1.xpose.msra.mxu0 0.0
    %290 = vmatprep.subr.mxu0 0.0
    %291 = vmatpush1.xpose.msra.mxu0 0.0
    %292 = vmatprep.subr.mxu0 0.0
    %293 = vmatpush1.xpose.msra.mxu0 0.0
    %294 = vmatprep.subr.mxu0 0.0
    %295 = vmatpush1.xpose.msra.mxu0 0.0
    %296 = vmatprep.subr.mxu0 0.0
    %297 = vmatpush1.xpose.msra.mxu0 0.0
    %298 = vmatprep.subr.mxu0 0.0
    %299 = vmatpush1.xpose.msra.mxu0 0.0
    %300 = vmatprep.subr.mxu0 0.0
    %301 = vmatpush1.xpose.msra.mxu0 0.0
    %302 = vmatprep.subr.mxu0 0.0
    %303 = vmatpush1.xpose.msra.mxu0 0.0
    %304 = vmatprep.subr.mxu0 0.0
    %305 = vmatpush1.xpose.msra.mxu0 0.0
    %306 = vmatprep.subr.mxu0 0.0
    %307 = vmatpush1.xpose.msra.mxu0 0.0
    %308 = vmatprep.subr.mxu0 0.0
    %309 = vmatpush1.xpose.msra.mxu0 0.0
    %310 = vmatprep.subr.mxu0 0.0
    %311 = vmatpush1.xpose.msra.mxu0 0.0
    %312 = vmatprep.subr.mxu0 0.0
    %313 = vmatpush1.xpose.msra.mxu0 0.0
    %314 = vmatprep.subr.mxu0 0.0
    %315 = vmatpush1.xpose.msra.mxu0 0.0
    %316 = vmatprep.subr.mxu0 0.0
    %317 = vmatpush1.xpose.msra.mxu0 0.0
    %318 = vmatprep.subr.mxu0 0.0
    %319 = vmatpush1.xpose.msra.mxu0 0.0
    %320 = vmatprep.subr.mxu0 0.0
    %321 = vmatpush1.xpose.msra.mxu0 0.0
    %322 = vmatprep.subr.mxu0 0.0
    %323 = vmatpush1.xpose.msra.mxu0 0.0
    %324 = vmatprep.subr.mxu0 0.0
    %325 = vmatpush1.xpose.msra.mxu0 0.0
    %326 = vmatprep.subr.mxu0 0.0
    %327 = vmatpush1.xpose.msra.mxu0 0.0
    %328 = vmatprep.subr.mxu0 0.0
    %329 = vmatpush1.xpose.msra.mxu0 0.0
    %330 = vmatprep.subr.mxu0 0.0
    %331 = vmatpush1.xpose.msra.mxu0 0.0
    %332 = vmatprep.subr.mxu0 0.0
    %333 = vmatpush1.xpose.msra.mxu0 0.0
    %334 = vmatprep.subr.mxu0 0.0
    %335 = vmatpush1.xpose.msra.mxu0 0.0
    %336 = vmatprep.subr.mxu0 0.0
    %337 = vmatpush1.xpose.msra.mxu0 0.0
    %338 = vmatprep.subr.mxu0 0.0
    %339 = vmatpush1.xpose.msra.mxu0 0.0
    %340 = vmatprep.mubr.f32.mxu0 0.0
    %341 = vmatmul.mubr.f32.gmra.mrb[0].mxu0 %v274
    %v342 = vpop.f32.mrb[0].mxu0
    %v343 = vadd.f32 0.0, %v342
    %v344 = vpop.f32.mrb[0].mxu0
    %345 = vdwg.mxu0
    %v346 = vadd.f32 %v272, %v343
    %vm347 = vcmask 261120
    %v349 = vsel %vm347, %v346, 0
    %351 = vmatprep.subr.mxu0 0.0
    %352 = vmatpush1.msra.mxu0 %v62
    %353 = vmatprep.subr.mxu0 0.0
    %354 = vmatpush1.msra.mxu0 %v63
    %355 = vmatprep.subr.mxu0 0.0
    %356 = vmatpush1.msra.mxu0 %v64
    %357 = vmatprep.subr.mxu0 0.0
    %358 = vmatpush1.msra.mxu0 %v65
    %359 = vmatprep.subr.mxu0 0.0
    %360 = vmatpush1.msra.mxu0 0.0
    %361 = vmatprep.subr.mxu0 0.0
    %362 = vmatpush1.msra.mxu0 0.0
    %363 = vmatprep.subr.mxu0 0.0
    %364 = vmatpush1.msra.mxu0 0.0
    %365 = vmatprep.subr.mxu0 0.0
    %366 = vmatpush1.msra.mxu0 0.0
    %367 = vmatprep.subr.mxu0 0.0
    %368 = vmatpush1.msra.mxu0 0.0
    %369 = vmatprep.subr.mxu0 0.0
    %370 = vmatpush1.msra.mxu0 0.0
    %371 = vmatprep.subr.mxu0 0.0
    %372 = vmatpush1.msra.mxu0 0.0
    %373 = vmatprep.subr.mxu0 0.0
    %374 = vmatpush1.msra.mxu0 0.0
    %375 = vmatprep.subr.mxu0 0.0
    %376 = vmatpush1.msra.mxu0 0.0
    %377 = vmatprep.subr.mxu0 0.0
    %378 = vmatpush1.msra.mxu0 0.0
    %379 = vmatprep.subr.mxu0 0.0
    %380 = vmatpush1.msra.mxu0 0.0
    %381 = vmatprep.subr.mxu0 0.0
    %382 = vmatpush1.msra.mxu0 0.0
    %383 = vmatprep.subr.mxu0 0.0
    %384 = vmatpush1.msra.mxu0 0.0
    %385 = vmatprep.subr.mxu0 0.0
    %386 = vmatpush1.msra.mxu0 0.0
    %387 = vmatprep.subr.mxu0 0.0
    %388 = vmatpush1.msra.mxu0 0.0
    %389 = vmatprep.subr.mxu0 0.0
    %390 = vmatpush1.msra.mxu0 0.0
    %391 = vmatprep.subr.mxu0 0.0
    %392 = vmatpush1.msra.mxu0 0.0
    %393 = vmatprep.subr.mxu0 0.0
    %394 = vmatpush1.msra.mxu0 0.0
    %395 = vmatprep.subr.mxu0 0.0
    %396 = vmatpush1.msra.mxu0 0.0
    %397 = vmatprep.subr.mxu0 0.0
    %398 = vmatpush1.msra.mxu0 0.0
    %399 = vmatprep.subr.mxu0 0.0
    %400 = vmatpush1.msra.mxu0 0.0
    %401 = vmatprep.subr.mxu0 0.0
    %402 = vmatpush1.msra.mxu0 0.0
    %403 = vmatprep.subr.mxu0 0.0
    %404 = vmatpush1.msra.mxu0 0.0
    %405 = vmatprep.subr.mxu0 0.0
    %406 = vmatpush1.msra.mxu0 0.0
    %407 = vmatprep.subr.mxu0 0.0
    %408 = vmatpush1.msra.mxu0 0.0
    %409 = vmatprep.subr.mxu0 0.0
    %410 = vmatpush1.msra.mxu0 0.0
    %411 = vmatprep.subr.mxu0 0.0
    %412 = vmatpush1.msra.mxu0 0.0
    %413 = vmatprep.subr.mxu0 0.0
    %414 = vmatpush1.msra.mxu0 0.0
    %415 = vmatprep.mubr.f32.mxu0 0.0
    %416 = vmatmul.mubr.f32.gmra.mrb[0].mxu0 %v349
    %v417 = vpop.f32.mrb[0].mxu0
    %v418 = vadd.f32 %v68, %v417
    %v419 = vpop.f32.mrb[0].mxu0
    %420 = vdwg.mxu0
    %421 = vst [vmem:[%s2] sm:$0x1] %v418
    // Predicated region
    $region14: #{kalman_filter_forward.1} parent=1 // pred_check
      _
    $region15: #{kalman_filter_forward.1} parent=1 // pred_check_branch
      %423 = sbr.rel (0) target = $region17
    $region16: #{kalman_filter_forward.1} parent=1 // pred_region
      _
    $region17: #{kalman_filter_forward.1} parent=1 // pred_fallthru
      _
    // Predicated region
    $region18: #{kalman_filter_forward.1} parent=1 // pred_check
      _
    $region19: #{kalman_filter_forward.1} parent=1 // pred_check_branch
      %425 = sbr.rel (0) target = $region21
    $region20: #{kalman_filter_forward.1} parent=1 // pred_region
      _
    $region21: #{kalman_filter_forward.1} parent=1 // pred_fallthru
      _
    %426 = vsyncpa [#allocation3], 1

</llo_original>
